<compile_context>
chip_gen: v7x
topology: tpu7x:2x2x1
jax: 0.10.0
libtpu: 0.0.40
codegen_flags: <defaults>
</compile_context>

<pallas_src>
import functools

import jax
import jax.numpy as jnp
from jax.experimental import pallas as pl
from jax.experimental.pallas import tpu as pltpu


def _round_up(n: int, m: int) -> int:
    return ((n + m - 1) // m) * m


def _policy_kernel(x_ref, mask_ref, w1_ref, b1_ref, w2_ref, b2_ref, o_ref,
                   *, compute_dtype):
    # ----- fc1: (bb, S) @ (S, H) + (1, H), bf16 MXU inputs, f32 accumulation -----
    h = jnp.dot(x_ref[...].astype(compute_dtype),
                w1_ref[...].astype(compute_dtype),
                preferred_element_type=jnp.float32)
    h = h + b1_ref[...]

    # ----- dropout: mask is pre-scaled to {0, 1/(1-p)} (ones when not training) -----
    h = h * mask_ref[...]

    # ----- relu -----
    h = jnp.maximum(h, 0.0)

    # ----- fc2: (bb, H) @ (H, A) + (1, A) -----
    logits = jnp.dot(h.astype(compute_dtype),
                     w2_ref[...].astype(compute_dtype),
                     preferred_element_type=jnp.float32)
    logits = logits + b2_ref[...]

    # ----- softmax over dim=1 (numerically stable) -----
    m = jnp.max(logits, axis=-1, keepdims=True)
    e = jnp.exp(logits - m)
    denom = jnp.sum(e, axis=-1, keepdims=True)
    o_ref[...] = (e / denom).astype(o_ref.dtype)


def policy_net_forward(x, w1, b1, w2, b2, *, drop_p=0.0, training=True,
                       rng_key=None, block_b=256,
                       compute_dtype=jnp.bfloat16):
    """PolicyNet forward pass as one Pallas TPU kernel, tiled over the batch.

    x  : (B, state_dim)  float32
    w1 : (state_dim, hidden_dim),  b1 : (hidden_dim,)
    w2 : (hidden_dim, action_num), b2 : (action_num,)
    returns action probabilities (B, action_num) float32.
    """
    B, S = x.shape
    H = w1.shape[1]
    A = w2.shape[1]

    # Tile the batch; block must be a multiple of 8 sublanes.
    bb = min(int(block_b), _round_up(B, 8))
    B_pad = _round_up(B, bb)
    if B_pad != B:
        x = jnp.pad(x, ((0, B_pad - B), (0, 0)))

    # Dropout mask generated on the host side (inverted dropout, pre-scaled).
    # TODO(synk): in-kernel TPU hardware PRNG (pltpu.prng_*) has no interpret/CPU
    # lowering, so randomness lives in the wrapper; semantics match nn.Dropout.
    if training and drop_p > 0.0:
        if rng_key is None:
            rng_key = jax.random.PRNGKey(0)
        keep = jax.random.bernoulli(rng_key, 1.0 - float(drop_p), (B_pad, H))
        mask = keep.astype(jnp.float32) * (1.0 / (1.0 - float(drop_p)))
    else:
        mask = jnp.ones((B_pad, H), dtype=jnp.float32)

    b1_2d = b1.reshape(1, H).astype(jnp.float32)
    b2_2d = b2.reshape(1, A).astype(jnp.float32)

    grid = (B_pad // bb,)
    kernel = functools.partial(_policy_kernel, compute_dtype=compute_dtype)

    cost = pl.CostEstimate(
        flops=2 * B_pad * (S * H + H * A),
        transcendentals=B_pad * A,
        bytes_accessed=4 * (B_pad * S + B_pad * H + S * H + H + H * A + A
                            + B_pad * A),
    )

    out = pl.pallas_call(
        kernel,
        out_shape=jax.ShapeDtypeStruct((B_pad, A), jnp.float32),
        grid=grid,
        in_specs=[
            pl.BlockSpec((bb, S), lambda i: (i, 0)),   # x tile
            pl.BlockSpec((bb, H), lambda i: (i, 0)),   # dropout mask tile
            pl.BlockSpec((S, H), lambda i: (0, 0)),    # w1 (resident)
            pl.BlockSpec((1, H), lambda i: (0, 0)),    # b1 (resident)
            pl.BlockSpec((H, A), lambda i: (0, 0)),    # w2 (resident)
            pl.BlockSpec((1, A), lambda i: (0, 0)),    # b2 (resident)
        ],
        out_specs=pl.BlockSpec((bb, A), lambda i: (i, 0)),
        compiler_params=pltpu.CompilerParams(
            dimension_semantics=("parallel",)),
        cost_estimate=cost,
    )(x, mask, w1, b1_2d, w2, b2_2d)

    return out[:B]


def init_policy_net_params(key, state_dim, hidden_dim, action_num):
    """Deterministic init mimicking nn.Linear's default U(-1/sqrt(fan_in), 1/sqrt(fan_in))."""
    k1, k2, k3, k4 = jax.random.split(key, 4)
    bound1 = 1.0 / (state_dim ** 0.5)
    bound2 = 1.0 / (hidden_dim ** 0.5)
    w1 = jax.random.uniform(k1, (state_dim, hidden_dim), jnp.float32, -bound1, bound1)
    b1 = jax.random.uniform(k2, (hidden_dim,), jnp.float32, -bound1, bound1)
    w2 = jax.random.uniform(k3, (hidden_dim, action_num), jnp.float32, -bound2, bound2)
    b2 = jax.random.uniform(k4, (action_num,), jnp.float32, -bound2, bound2)
    return w1, b1, w2, b2


def _reference_forward(x, w1, b1, w2, b2):
    """Pure-JAX f32 reference (eval mode, no dropout)."""
    h = jnp.maximum(x @ w1 + b1[None, :], 0.0)
    logits = h @ w2 + b2[None, :]
    logits = logits - jnp.max(logits, axis=1, keepdims=True)
    e = jnp.exp(logits)
    return e / jnp.sum(e, axis=1, keepdims=True)


if __name__ == "__main__":
    # Small shapes consistent with the module: state_dim=16, hidden_dim=128, action_num=8.
    batch, state_dim, hidden_dim, action_num = 24, 16, 128, 8
    drop_p = 0.5

    key = jax.random.PRNGKey(0)
    kx, kparams, kdrop = jax.random.split(key, 3)
    x = jax.random.normal(kx, (batch, state_dim), dtype=jnp.float32)
    w1, b1, w2, b2 = init_policy_net_params(kparams, state_dim, hidden_dim, action_num)

    # Training mode (dropout active); small block_b so the batch grid has >1 step.
    probs_train = policy_net_forward(x, w1, b1, w2, b2, drop_p=drop_p,
                                     training=True, rng_key=kdrop, block_b=8)
    probs_train = jax.block_until_ready(probs_train)
    assert probs_train.shape == (batch, action_num)
    assert bool(jnp.all(jnp.isfinite(probs_train)))
    assert bool(jnp.allclose(jnp.sum(probs_train, axis=1), 1.0, atol=1e-5))

    # Eval mode (no dropout): compare against the f32 reference. bf16 MXU inputs
    # with f32 accumulation introduce ~1e-2 relative error in the logits at most.
    probs_eval = policy_net_forward(x, w1, b1, w2, b2, drop_p=drop_p,
                                    training=False, block_b=8)
    probs_eval = jax.block_until_ready(probs_eval)
    ref = _reference_forward(x, w1, b1, w2, b2)
    assert probs_eval.shape == (batch, action_num)
    assert bool(jnp.allclose(jnp.sum(probs_eval, axis=1), 1.0, atol=1e-5))
    assert bool(jnp.allclose(probs_eval, ref, atol=3e-2))

    print("KERNEL_OK")
</pallas_src>

<mosaic_0001>
module attributes {stable_mosaic.version = 11 : i64} {
  func.func @_policy_kernel(%arg0: i32, %arg1: memref<8x16xf32, #tpu.memory_space<vmem>>, %arg2: memref<8x128xf32, #tpu.memory_space<vmem>>, %arg3: memref<16x128xf32, #tpu.memory_space<vmem>>, %arg4: memref<1x128xf32, #tpu.memory_space<vmem>>, %arg5: memref<128x8xf32, #tpu.memory_space<vmem>>, %arg6: memref<1x8xf32, #tpu.memory_space<vmem>>, %arg7: memref<8x8xf32, #tpu.memory_space<vmem>>) attributes {dimension_semantics = [#tpu.dimension_semantics<parallel>], iteration_bounds = array<i64: 3>, scalar_prefetch = 0 : i64, scratch_operands = 0 : i64, tpu.core_type = #tpu.core_type<tc>, window_params = [{transform_indices = @transform_0, window_bounds = array<i64: 8, 16>}, {transform_indices = @transform_1, window_bounds = array<i64: 8, 128>}, {pipeline_mode = #tpu.pipeline_mode<synchronous>, transform_indices = @transform_2, window_bounds = array<i64: 16, 128>}, {pipeline_mode = #tpu.pipeline_mode<synchronous>, transform_indices = @transform_3, window_bounds = array<i64: 1, 128>}, {pipeline_mode = #tpu.pipeline_mode<synchronous>, transform_indices = @transform_4, window_bounds = array<i64: 128, 8>}, {pipeline_mode = #tpu.pipeline_mode<synchronous>, transform_indices = @transform_5, window_bounds = array<i64: 1, 8>}, {transform_indices = @transform_6, window_bounds = array<i64: 8, 8>}]} {
    %c0 = arith.constant 0 : index
    %c0_0 = arith.constant 0 : index
    %0 = vector.load %arg1[%c0, %c0_0] : memref<8x16xf32, #tpu.memory_space<vmem>>, vector<8x16xf32>
    %1 = arith.truncf %0 : vector<8x16xf32> to vector<8x16xbf16>
    %c0_1 = arith.constant 0 : index
    %c0_2 = arith.constant 0 : index
    %2 = vector.load %arg3[%c0_1, %c0_2] : memref<16x128xf32, #tpu.memory_space<vmem>>, vector<16x128xf32>
    %3 = arith.truncf %2 : vector<16x128xf32> to vector<16x128xbf16>
    %cst = arith.constant dense<0.000000e+00> : vector<8x128xf32>
    %4 = tpu.matmul %1, %3, %cst {dimension_numbers = #tpu.dot_dimension_numbers<[1], [0], [0], [1], [0, 0, 1, 1], [], []>} : vector<8x16xbf16>, vector<16x128xbf16>, vector<8x128xf32> -> vector<8x128xf32>
    %c0_3 = arith.constant 0 : index
    %c0_4 = arith.constant 0 : index
    %5 = vector.load %arg4[%c0_3, %c0_4] : memref<1x128xf32, #tpu.memory_space<vmem>>, vector<1x128xf32>
    %6 = vector.broadcast %5 : vector<1x128xf32> to vector<8x128xf32>
    %7 = arith.addf %4, %6 : vector<8x128xf32>
    %c0_5 = arith.constant 0 : index
    %c0_6 = arith.constant 0 : index
    %8 = vector.load %arg2[%c0_5, %c0_6] : memref<8x128xf32, #tpu.memory_space<vmem>>, vector<8x128xf32>
    %9 = arith.mulf %7, %8 : vector<8x128xf32>
    %cst_7 = arith.constant 0.000000e+00 : f32
    %10 = vector.broadcast %cst_7 : f32 to vector<8x128xf32>
    %11 = arith.maximumf %9, %10 : vector<8x128xf32>
    %12 = arith.truncf %11 : vector<8x128xf32> to vector<8x128xbf16>
    %c0_8 = arith.constant 0 : index
    %c0_9 = arith.constant 0 : index
    %13 = vector.load %arg5[%c0_8, %c0_9] : memref<128x8xf32, #tpu.memory_space<vmem>>, vector<128x8xf32>
    %14 = arith.truncf %13 : vector<128x8xf32> to vector<128x8xbf16>
    %cst_10 = arith.constant dense<0.000000e+00> : vector<8x8xf32>
    %15 = tpu.matmul %12, %14, %cst_10 {dimension_numbers = #tpu.dot_dimension_numbers<[1], [0], [0], [1], [0, 0, 1, 1], [], []>} : vector<8x128xbf16>, vector<128x8xbf16>, vector<8x8xf32> -> vector<8x8xf32>
    %c0_11 = arith.constant 0 : index
    %c0_12 = arith.constant 0 : index
    %16 = vector.load %arg6[%c0_11, %c0_12] : memref<1x8xf32, #tpu.memory_space<vmem>>, vector<1x8xf32>
    %17 = vector.broadcast %16 : vector<1x8xf32> to vector<8x8xf32>
    %18 = arith.addf %15, %17 : vector<8x8xf32>
    %cst_13 = arith.constant dense<0xFF800000> : vector<8xf32>
    %19 = vector.multi_reduction <maximumf>, %18, %cst_13 [1] : vector<8x8xf32> to vector<8xf32>
    %20 = vector.shape_cast %19 : vector<8xf32> to vector<8x1xf32>
    %21 = vector.broadcast %20 : vector<8x1xf32> to vector<8x8xf32>
    %22 = arith.subf %18, %21 : vector<8x8xf32>
    %23 = math.exp %22 : vector<8x8xf32>
    %cst_14 = arith.constant dense<0.000000e+00> : vector<8xf32>
    %24 = vector.multi_reduction <add>, %23, %cst_14 [1] : vector<8x8xf32> to vector<8xf32>
    %25 = vector.shape_cast %24 : vector<8xf32> to vector<8x1xf32>
    %26 = vector.broadcast %25 : vector<8x1xf32> to vector<8x8xf32>
    %27 = arith.divf %23, %26 : vector<8x8xf32>
    %c0_15 = arith.constant 0 : index
    %c0_16 = arith.constant 0 : index
    %28 = vector.load %arg7[%c0_15, %c0_16] : memref<8x8xf32, #tpu.memory_space<vmem>>, vector<8x8xf32>
    tpu.vector_store %arg7[%c0_15, %c0_16], %27 {strides = array<i32>} : memref<8x8xf32, #tpu.memory_space<vmem>>, vector<8x8xf32>,
    return
  }
  func.func @transform_0(%arg0: i32) -> (i32, i32) {
    %c0_i32 = arith.constant 0 : i32
    %c0_i32_0 = arith.constant 0 : i32
    return %arg0, %c0_i32 : i32, i32
  }
  func.func @transform_1(%arg0: i32) -> (i32, i32) {
    %c0_i32 = arith.constant 0 : i32
    %c0_i32_0 = arith.constant 0 : i32
    return %arg0, %c0_i32 : i32, i32
  }
  func.func @transform_2(%arg0: i32) -> (i32, i32) {
    %c0_i32 = arith.constant 0 : i32
    %c0_i32_0 = arith.constant 0 : i32
    %c0_i32_1 = arith.constant 0 : i32
    return %c0_i32, %c0_i32_0 : i32, i32
  }
  func.func @transform_3(%arg0: i32) -> (i32, i32) {
    %c0_i32 = arith.constant 0 : i32
    %c0_i32_0 = arith.constant 0 : i32
    %c0_i32_1 = arith.constant 0 : i32
    return %c0_i32, %c0_i32_0 : i32, i32
  }
  func.func @transform_4(%arg0: i32) -> (i32, i32) {
    %c0_i32 = arith.constant 0 : i32
    %c0_i32_0 = arith.constant 0 : i32
    %c0_i32_1 = arith.constant 0 : i32
    return %c0_i32, %c0_i32_0 : i32, i32
  }
  func.func @transform_5(%arg0: i32) -> (i32, i32) {
    %c0_i32 = arith.constant 0 : i32
    %c0_i32_0 = arith.constant 0 : i32
    %c0_i32_1 = arith.constant 0 : i32
    return %c0_i32, %c0_i32_0 : i32, i32
  }
  func.func @transform_6(%arg0: i32) -> (i32, i32) {
    %c0_i32 = arith.constant 0 : i32
    %c0_i32_0 = arith.constant 0 : i32
    return %arg0, %c0_i32 : i32, i32
  }
}

</mosaic_0001>

<llo_original>
// kernel: tpu_custom_call.1
$region0: #{tpu_custom_call.1}
  #allocation0 [shape = 'u32[]', space=smem, size = 0x4, offset = 0x4, fixed_abs, tag = 'smem constant byte address 0x4 - core index']
  #allocation1 [shape = 'u32[144,128]{1,0:T(1,128)}', space=vmem, size = 0x12000, scoped, tag = 'internal scratch']
  %s0 = inlined_call_operand.vmem [shape: f32[24,16], index: 0, kind: input, shape index: {}]
  %s1 = inlined_call_operand.vmem [shape: f32[24,128], index: 1, kind: input, shape index: {}]
  %s2 = inlined_call_operand.vmem [shape: f32[16,128], index: 2, kind: input, shape index: {}]
  %s3 = inlined_call_operand.vmem [shape: f32[1,128], index: 3, kind: input, shape index: {}]
  %s4 = inlined_call_operand.vmem [shape: f32[128,8], index: 4, kind: input, shape index: {}]
  %s5 = inlined_call_operand.vmem [shape: f32[1,8], index: 5, kind: input, shape index: {}]
  %s6 = inlined_call_operand.vmem [shape: f32[24,8], index: 6, kind: output, shape index: {}]
  %s7 = sld [smem:[#allocation0]]
  $region57: #{tpu_custom_call.1} parent=0
    _
  %s9 = ssub.s32 1, %s7
  %s10 = scalar_select 0, %s9, %s7
  loop: start=0, step=1, limit=5
  $region2: #{tpu_custom_call.1} parent=0 // loop_pre_header
    _
  $region3: #{tpu_custom_call.1} parent=0 // loop_header
    %s12 = sphi 0, %s16
    %p13 = scmp.ge.s32.totalorder %s12, 5
    %s22 = sphi 0, %s24
    %s25 = sphi 0, %s22
    %s26 = sphi 0, %s25
    %s42 = sphi 0, %s26
    %s48 = sphi 0, %s50
    %s51 = sphi 0, %s48
    %s52 = sphi 0, %s51
    %s68 = sphi 0, %s52
    %s72 = sphi 0, %s72
    %s74 = sphi 0, %s72
    %s75 = sphi 0, %s74
    %s89 = sphi 0, %s75
    %s93 = sphi 0, %s93
    %s95 = sphi 0, %s93
    %s96 = sphi 0, %s95
    %s110 = sphi 0, %s96
    %s114 = sphi 0, %s114
    %s116 = sphi 0, %s114
    %s117 = sphi 0, %s116
    %s131 = sphi 0, %s117
    %s135 = sphi 0, %s135
    %s137 = sphi 0, %s135
    %s138 = sphi 0, %s137
    %s152 = sphi 0, %s138
    %s158 = sphi 0, %s160
    %s161 = sphi 0, %s158
    %s162 = sphi 0, %s161
    %s178 = sphi 0, %s162
  $region4: #{tpu_custom_call.1} parent=0 // loop_header_branch
    %15 = sbr.rel (%p13) target = $region8
  $region5: #{tpu_custom_call.1} parent=0 // loop_body
    %s17 = ssub.s32 %s12, 1
    %s18 = ssub.s32 %s12, 2
    %s19 = sadd.s32 %s12, 1
    %s20 = ssub.s32 %s12, %s19
    %p21 = scmp.eq.s32.totalorder %s20, 0
    %s23 = sadd.s32 %s22, 1
    %s24 = scalar_select %p21, %s22, %s23
    %p27 = pneg %p21
    %p28 = scmp.eq.s32.totalorder %s12, 2
    %p29 = por %p27, %p28
    %p30 = scmp.ne.s32.totalorder %s22, %s25
    %p31 = scmp.eq.s32.totalorder %s12, 0
    %p32 = por %p30, %p31
    %p33 = scmp.ne.s32.totalorder %s22, %s25
    %p34 = scmp.eq.s32.totalorder %s17, 2
    %p35 = por %p33, %p34
    %p36 = scmp.ne.s32.totalorder %s25, %s26
    %p37 = scmp.eq.s32.totalorder %s17, 0
    %p38 = por %p36, %p37
    %p39 = scmp.ne.s32.totalorder %s25, %s26
    %p40 = scmp.eq.s32.totalorder %s18, 2
    %p41 = por %p39, %p40
    %p43 = scmp.ne.s32.totalorder %s26, %s42
    %p44 = scmp.eq.s32.totalorder %s18, 0
    %p45 = por %p43, %p44
    %s46 = ssub.s32 %s12, %s19
    %p47 = scmp.eq.s32.totalorder %s46, 0
    %s49 = sadd.s32 %s48, 1
    %s50 = scalar_select %p47, %s48, %s49
    %p53 = pneg %p47
    %p54 = scmp.eq.s32.totalorder %s12, 2
    %p55 = por %p53, %p54
    %p56 = scmp.ne.s32.totalorder %s48, %s51
    %p57 = scmp.eq.s32.totalorder %s12, 0
    %p58 = por %p56, %p57
    %p59 = scmp.ne.s32.totalorder %s48, %s51
    %p60 = scmp.eq.s32.totalorder %s17, 2
    %p61 = por %p59, %p60
    %p62 = scmp.ne.s32.totalorder %s51, %s52
    %p63 = scmp.eq.s32.totalorder %s17, 0
    %p64 = por %p62, %p63
    %p65 = scmp.ne.s32.totalorder %s51, %s52
    %p66 = scmp.eq.s32.totalorder %s18, 2
    %p67 = por %p65, %p66
    %p69 = scmp.ne.s32.totalorder %s52, %s68
    %p70 = scmp.eq.s32.totalorder %s18, 0
    %p71 = por %p69, %p70
    %s73 = sadd.s32 %s72, 1
    %p76 = scmp.eq.s32.totalorder %s12, 2
    %p77 = scmp.ne.s32.totalorder %s72, %s74
    %p78 = scmp.eq.s32.totalorder %s12, 0
    %p79 = por %p77, %p78
    %p80 = scmp.ne.s32.totalorder %s72, %s74
    %p81 = scmp.eq.s32.totalorder %s17, 2
    %p82 = por %p80, %p81
    %p83 = scmp.ne.s32.totalorder %s74, %s75
    %p84 = scmp.eq.s32.totalorder %s17, 0
    %p85 = por %p83, %p84
    %p86 = scmp.ne.s32.totalorder %s74, %s75
    %p87 = scmp.eq.s32.totalorder %s18, 2
    %p88 = por %p86, %p87
    %p90 = scmp.ne.s32.totalorder %s75, %s89
    %p91 = scmp.eq.s32.totalorder %s18, 0
    %p92 = por %p90, %p91
    %s94 = sadd.s32 %s93, 1
    %p97 = scmp.eq.s32.totalorder %s12, 2
    %p98 = scmp.ne.s32.totalorder %s93, %s95
    %p99 = scmp.eq.s32.totalorder %s12, 0
    %p100 = por %p98, %p99
    %p101 = scmp.ne.s32.totalorder %s93, %s95
    %p102 = scmp.eq.s32.totalorder %s17, 2
    %p103 = por %p101, %p102
    %p104 = scmp.ne.s32.totalorder %s95, %s96
    %p105 = scmp.eq.s32.totalorder %s17, 0
    %p106 = por %p104, %p105
    %p107 = scmp.ne.s32.totalorder %s95, %s96
    %p108 = scmp.eq.s32.totalorder %s18, 2
    %p109 = por %p107, %p108
    %p111 = scmp.ne.s32.totalorder %s96, %s110
    %p112 = scmp.eq.s32.totalorder %s18, 0
    %p113 = por %p111, %p112
    %s115 = sadd.s32 %s114, 1
    %p118 = scmp.eq.s32.totalorder %s12, 2
    %p119 = scmp.ne.s32.totalorder %s114, %s116
    %p120 = scmp.eq.s32.totalorder %s12, 0
    %p121 = por %p119, %p120
    %p122 = scmp.ne.s32.totalorder %s114, %s116
    %p123 = scmp.eq.s32.totalorder %s17, 2
    %p124 = por %p122, %p123
    %p125 = scmp.ne.s32.totalorder %s116, %s117
    %p126 = scmp.eq.s32.totalorder %s17, 0
    %p127 = por %p125, %p126
    %p128 = scmp.ne.s32.totalorder %s116, %s117
    %p129 = scmp.eq.s32.totalorder %s18, 2
    %p130 = por %p128, %p129
    %p132 = scmp.ne.s32.totalorder %s117, %s131
    %p133 = scmp.eq.s32.totalorder %s18, 0
    %p134 = por %p132, %p133
    %s136 = sadd.s32 %s135, 1
    %p139 = scmp.eq.s32.totalorder %s12, 2
    %p140 = scmp.ne.s32.totalorder %s135, %s137
    %p141 = scmp.eq.s32.totalorder %s12, 0
    %p142 = por %p140, %p141
    %p143 = scmp.ne.s32.totalorder %s135, %s137
    %p144 = scmp.eq.s32.totalorder %s17, 2
    %p145 = por %p143, %p144
    %p146 = scmp.ne.s32.totalorder %s137, %s138
    %p147 = scmp.eq.s32.totalorder %s17, 0
    %p148 = por %p146, %p147
    %p149 = scmp.ne.s32.totalorder %s137, %s138
    %p150 = scmp.eq.s32.totalorder %s18, 2
    %p151 = por %p149, %p150
    %p153 = scmp.ne.s32.totalorder %s138, %s152
    %p154 = scmp.eq.s32.totalorder %s18, 0
    %p155 = por %p153, %p154
    %s156 = ssub.s32 %s12, %s19
    %p157 = scmp.eq.s32.totalorder %s156, 0
    %s159 = sadd.s32 %s158, 1
    %s160 = scalar_select %p157, %s158, %s159
    %p163 = pneg %p157
    %p164 = scmp.eq.s32.totalorder %s12, 2
    %p165 = por %p163, %p164
    %p166 = scmp.ne.s32.totalorder %s158, %s161
    %p167 = scmp.eq.s32.totalorder %s12, 0
    %p168 = por %p166, %p167
    %p169 = scmp.ne.s32.totalorder %s158, %s161
    %p170 = scmp.eq.s32.totalorder %s17, 2
    %p171 = por %p169, %p170
    %p172 = scmp.ne.s32.totalorder %s161, %s162
    %p173 = scmp.eq.s32.totalorder %s17, 0
    %p174 = por %p172, %p173
    %p175 = scmp.ne.s32.totalorder %s161, %s162
    %p176 = scmp.eq.s32.totalorder %s18, 2
    %p177 = por %p175, %p176
    %p179 = scmp.ne.s32.totalorder %s162, %s178
    %p180 = scmp.eq.s32.totalorder %s18, 0
    %p181 = por %p179, %p180
    %p182 = scmp.le.s32.totalorder 1, %s12
    %p183 = scmp.lt.s32.totalorder %s12, 4
    %p184 = pnand %p182, %p183
    %p185 = pneg %p184
    // Predicated region
    $region9: #{tpu_custom_call.1} parent=5 // pred_check
      _
    $region10: #{tpu_custom_call.1} parent=5 // pred_check_branch
      %187 = sbr.rel (%p184) target = $region12
    $region11: #{tpu_custom_call.1} parent=5 // pred_region
      %s188 = ssub.s32 %s12, 1
      // Predicated region
      $region13: #{tpu_custom_call.1} parent=11 // pred_check
        %p189 = pneg %p85
      $region14: #{tpu_custom_call.1} parent=11 // pred_check_branch
        %191 = sbr.rel (%p189) target = $region16
      $region15: #{tpu_custom_call.1} parent=11 // pred_region
        _
      $region16: #{tpu_custom_call.1} parent=11 // pred_fallthru
        _
      // Predicated region
      $region17: #{tpu_custom_call.1} parent=11 // pred_check
        %p192 = pneg %p106
      $region18: #{tpu_custom_call.1} parent=11 // pred_check_branch
        %194 = sbr.rel (%p192) target = $region20
      $region19: #{tpu_custom_call.1} parent=11 // pred_region
        _
      $region20: #{tpu_custom_call.1} parent=11 // pred_fallthru
        _
      // Predicated region
      $region21: #{tpu_custom_call.1} parent=11 // pred_check
        %p195 = pneg %p127
      $region22: #{tpu_custom_call.1} parent=11 // pred_check_branch
        %197 = sbr.rel (%p195) target = $region24
      $region23: #{tpu_custom_call.1} parent=11 // pred_region
        _
      $region24: #{tpu_custom_call.1} parent=11 // pred_fallthru
        _
      // Predicated region
      $region25: #{tpu_custom_call.1} parent=11 // pred_check
        %p198 = pneg %p148
      $region26: #{tpu_custom_call.1} parent=11 // pred_check_branch
        %200 = sbr.rel (%p198) target = $region28
      $region27: #{tpu_custom_call.1} parent=11 // pred_region
        _
      $region28: #{tpu_custom_call.1} parent=11 // pred_fallthru
        _
    $region12: #{tpu_custom_call.1} parent=5 // pred_fallthru
      _
    %p201 = scmp.lt.s32.totalorder %s12, 3
    // Predicated region
    $region29: #{tpu_custom_call.1} parent=5 // pred_check
      %p202 = pneg %p201
    $region30: #{tpu_custom_call.1} parent=5 // pred_check_branch
      %204 = sbr.rel (%p202) target = $region32
    $region31: #{tpu_custom_call.1} parent=5 // pred_region
      // Predicated region
      $region33: #{tpu_custom_call.1} parent=31 // pred_check
        %p205 = pneg %p32
      $region34: #{tpu_custom_call.1} parent=31 // pred_check_branch
        %207 = sbr.rel (%p205) target = $region36
      $region35: #{tpu_custom_call.1} parent=31 // pred_region
        %p208 = scmp.lt.s32.totalorder %s12, 2
        %s209 = scalar_select %p208, %s12, 2
        %s210 = smul.addr %s209, 8
        %s211 = scalar_lea.vmem %s0, %s210
      $region36: #{tpu_custom_call.1} parent=31 // pred_fallthru
        _
      // Predicated region
      $region37: #{tpu_custom_call.1} parent=31 // pred_check
        %p212 = pneg %p58
      $region38: #{tpu_custom_call.1} parent=31 // pred_check_branch
        %214 = sbr.rel (%p212) target = $region40
      $region39: #{tpu_custom_call.1} parent=31 // pred_region
        %p215 = scmp.lt.s32.totalorder %s12, 2
        %s216 = scalar_select %p215, %s12, 2
        %s217 = smul.addr %s216, 8
        %s218 = scalar_lea.vmem %s1, %s217
      $region40: #{tpu_custom_call.1} parent=31 // pred_fallthru
        _
    $region32: #{tpu_custom_call.1} parent=5 // pred_fallthru
      _
    %p219 = scmp.le.s32.totalorder 1, %s12
    %p220 = scmp.lt.s32.totalorder %s12, 4
    %p221 = pnand %p219, %p220
    %p222 = pneg %p221
    // Predicated region
    $region41: #{tpu_custom_call.1} parent=5 // pred_check
      _
    $region42: #{tpu_custom_call.1} parent=5 // pred_check_branch
      %224 = sbr.rel (%p221) target = $region44
    $region43: #{tpu_custom_call.1} parent=5 // pred_region
      %s225 = ssub.s32 %s12, 1
      %p226 = scmp.lt.s32.totalorder %s17, 2
      %s227 = scalar_select %p226, %s17, 2
      %s228 = smul.addr %s227, 8
      %s229 = scalar_lea.vmem %s0, %s228
      %p230 = pneg %p38
      %p231 = pneg %p35
      %p232 = scmp.lt.s32.totalorder %s17, 2
      %s233 = scalar_select %p232, %s17, 2
      %s234 = smul.addr %s233, 8
      %s235 = scalar_lea.vmem %s1, %s234
      %p236 = pneg %p64
      %p237 = pneg %p61
      %p238 = pneg %p85
      %p239 = pneg %p82
      %p240 = pneg %p106
      %p241 = pneg %p103
      %p242 = pneg %p127
      %p243 = pneg %p124
      %p244 = pneg %p148
      %p245 = pneg %p145
      %p246 = pneg %p174
      %p247 = pneg %p171
      %p248 = scmp.lt.s32.totalorder %s17, 2
      %s249 = scalar_select %p248, %s17, 2
      %s250 = smul.addr %s249, 8
      %s251 = scalar_lea.vmem %s6, %s250
      %p252 = scmp.lt.s32.totalorder %s17, 2
      %s253 = scalar_select %p252, %s17, 2
      %s254 = smul.addr %s253, 8
      %s255 = scalar_lea.vmem %s0, %s254
      %p256 = scmp.lt.s32.totalorder %s17, 2
      %s257 = scalar_select %p256, %s17, 2
      %s258 = smul.addr %s257, 8
      %s259 = scalar_lea.vmem %s1, %s258
      %p260 = scmp.lt.s32.totalorder %s17, 2
      %s261 = scalar_select %p260, %s17, 2
      %s262 = smul.addr %s261, 8
      %s263 = scalar_lea.vmem %s6, %s262
      %v265 = vld [vmem:[%s255] sm:$0xff]
      %v266 = vpack.c.bf16 %v265, %v265
      %v267 = vld [vmem:[%s2] sm:$0xff]
      %v268 = vld [vmem:[%s2 + $0x8] sm:$0xff]
      %v269 = vpack.c.bf16 %v268, %v267
      %v270 = vld [vmem:[%s3] sm:$0x1]
      %v272 = vlaneseq
      %v273 = vshrl.u32 %v272, 7
      %v274 = vsub.s32 0, %v273
      %v275 = vrot.slane %v270, %v274
      %vm277 = vcmask 130048
      %v279 = vsel %vm277, %v266, 0
      %281 = vmatprep.subr.bf16.mxu0 0
      %282 = vmatpush1.bf16.msra.mxu0 %v269
      %283 = vmatprep.subr.bf16.mxu0 0
      %284 = vmatpush1.bf16.msra.mxu0 0
      %285 = vmatprep.subr.bf16.mxu0 0
      %286 = vmatpush1.bf16.msra.mxu0 0
      %287 = vmatprep.subr.bf16.mxu0 0
      %288 = vmatpush1.bf16.msra.mxu0 0
      %289 = vmatprep.subr.bf16.mxu0 0
      %290 = vmatpush1.bf16.msra.mxu0 0
      %291 = vmatprep.subr.bf16.mxu0 0
      %292 = vmatpush1.bf16.msra.mxu0 0
      %293 = vmatprep.subr.bf16.mxu0 0
      %294 = vmatpush1.bf16.msra.mxu0 0
      %295 = vmatprep.subr.bf16.mxu0 0
      %296 = vmatpush1.bf16.msra.mxu0 0
      %297 = vmatprep.subr.bf16.mxu0 0
      %298 = vmatpush1.bf16.msra.mxu0 0
      %299 = vmatprep.subr.bf16.mxu0 0
      %300 = vmatpush1.bf16.msra.mxu0 0
      %301 = vmatprep.subr.bf16.mxu0 0
      %302 = vmatpush1.bf16.msra.mxu0 0
      %303 = vmatprep.subr.bf16.mxu0 0
      %304 = vmatpush1.bf16.msra.mxu0 0
      %305 = vmatprep.subr.bf16.mxu0 0
      %306 = vmatpush1.bf16.msra.mxu0 0
      %307 = vmatprep.subr.bf16.mxu0 0
      %308 = vmatpush1.bf16.msra.mxu0 0
      %309 = vmatprep.subr.bf16.mxu0 0
      %310 = vmatpush1.bf16.msra.mxu0 0
      %311 = vmatprep.subr.bf16.mxu0 0
      %312 = vmatpush1.bf16.msra.mxu0 0
      %313 = vmatprep.mubr.bf16.mxu0 0
      %314 = vmatmul.mubr.bf16.gmra.mrb[0].mxu0 %v279
      %v315 = vpop.f32.mrb[0].mxu0
      %v316 = vadd.f32 %v275, %v315
      %v317 = vpop.f32.mrb[0].mxu0
      %v318 = vpop.f32.mrb[0].mxu0
      %v319 = vpop.f32.mrb[0].mxu0
      %320 = vdwg.mxu0
      %v321 = vld [vmem:[%s259] sm:$0xff]
      %v322 = vmul.f32 %v316, %v321
      %v323 = vmax.f32 %v322, 0.0
      %v324 = vpack.c.bf16 %v323, %v323
      %v325 = vld [vmem:[%s4] sm:$0xff]
      %v326 = vld [vmem:[%s4 + $0x8] sm:$0xff]
      %v327 = vld [vmem:[%s4 + $0x10] sm:$0xff]
      %v328 = vld [vmem:[%s4 + $0x18] sm:$0xff]
      %v329 = vld [vmem:[%s4 + $0x20] sm:$0xff]
      %v330 = vld [vmem:[%s4 + $0x28] sm:$0xff]
      %v331 = vld [vmem:[%s4 + $0x30] sm:$0xff]
      %v332 = vld [vmem:[%s4 + $0x38] sm:$0xff]
      %v333 = vld [vmem:[%s4 + $0x40] sm:$0xff]
      %v334 = vld [vmem:[%s4 + $0x48] sm:$0xff]
      %v335 = vld [vmem:[%s4 + $0x50] sm:$0xff]
      %v336 = vld [vmem:[%s4 + $0x58] sm:$0xff]
      %v337 = vld [vmem:[%s4 + $0x60] sm:$0xff]
      %v338 = vld [vmem:[%s4 + $0x68] sm:$0xff]
      %v339 = vld [vmem:[%s4 + $0x70] sm:$0xff]
      %v340 = vld [vmem:[%s4 + $0x78] sm:$0xff]
      %v341 = vpack.c.bf16 %v326, %v325
      %v342 = vpack.c.bf16 %v328, %v327
      %v343 = vpack.c.bf16 %v330, %v329
      %v344 = vpack.c.bf16 %v332, %v331
      %v345 = vpack.c.bf16 %v334, %v333
      %v346 = vpack.c.bf16 %v336, %v335
      %v347 = vpack.c.bf16 %v338, %v337
      %v348 = vpack.c.bf16 %v340, %v339
      %v349 = vld [vmem:[%s5] sm:$0x1]
      %v351 = vlaneseq
      %v352 = vshrl.u32 %v351, 7
      %v353 = vsub.s32 0, %v352
      %v354 = vrot.slane %v349, %v353
      %356 = vmatprep.subr.bf16.mxu0 0
      %357 = vmatpush1.bf16.msra.mxu0 %v341
      %358 = vmatprep.subr.bf16.mxu0 0
      %359 = vmatpush1.bf16.msra.mxu0 %v342
      %360 = vmatprep.subr.bf16.mxu0 0
      %361 = vmatpush1.bf16.msra.mxu0 %v343
      %362 = vmatprep.subr.bf16.mxu0 0
      %363 = vmatpush1.bf16.msra.mxu0 %v344
      %364 = vmatprep.subr.bf16.mxu0 0
      %365 = vmatpush1.bf16.msra.mxu0 %v345
      %366 = vmatprep.subr.bf16.mxu0 0
      %367 = vmatpush1.bf16.msra.mxu0 %v346
      %368 = vmatprep.subr.bf16.mxu0 0
      %369 = vmatpush1.bf16.msra.mxu0 %v347
      %370 = vmatprep.subr.bf16.mxu0 0
      %371 = vmatpush1.bf16.msra.mxu0 %v348
      %372 = vmatprep.subr.bf16.mxu0 0
      %373 = vmatpush1.bf16.msra.mxu0 0
      %374 = vmatprep.subr.bf16.mxu0 0
      %375 = vmatpush1.bf16.msra.mxu0 0
      %376 = vmatprep.subr.bf16.mxu0 0
      %377 = vmatpush1.bf16.msra.mxu0 0
      %378 = vmatprep.subr.bf16.mxu0 0
      %379 = vmatpush1.bf16.msra.mxu0 0
      %380 = vmatprep.subr.bf16.mxu0 0
      %381 = vmatpush1.bf16.msra.mxu0 0
      %382 = vmatprep.subr.bf16.mxu0 0
      %383 = vmatpush1.bf16.msra.mxu0 0
      %384 = vmatprep.subr.bf16.mxu0 0
      %385 = vmatpush1.bf16.msra.mxu0 0
      %386 = vmatprep.subr.bf16.mxu0 0
      %387 = vmatpush1.bf16.msra.mxu0 0
      %388 = vmatprep.mubr.bf16.mxu0 0
      %389 = vmatmul.mubr.bf16.gmra.mrb[0].mxu0 %v324
      %v390 = vpop.f32.mrb[0].mxu0
      %v391 = vadd.f32 %v354, %v390
      %v392 = vpop.f32.mrb[0].mxu0
      %v393 = vpop.f32.mrb[0].mxu0
      %v394 = vpop.f32.mrb[0].mxu0
      %395 = vdwg.mxu0
      %vm396 = vcmask 64512
      %v397 = vsel %vm396, %v391, -inf
      %398 = vmax.xlane.f32.xlu0 %v397
      %v399 = vpop.xlane.xlu0 %398
      %v400 = vsub.f32 %v391, %v399
      %v401 = vmul.f32 %v400, 1.442695
      %v402 = vpow.pop %v401
      %v403 = vsel %vm396, %v402, 0.0
      %404 = vadd.xlane.f32.xlu0 %v403
      %v405 = vpop.xlane.xlu0 %404
      %v406 = vrcp.pop %v405
      %v407 = vmul.f32 %v402, %v406
      %408 = vst.msk [vmem:[%s263] sm:$0xff] %vm396, %v407
      %p409 = scmp.lt.s32.totalorder %s17, 2
      %s410 = scalar_select %p409, %s17, 2
      %s411 = smul.addr %s410, 8
      %s412 = scalar_lea.vmem %s6, %s411
      // Predicated region
      $region45: #{tpu_custom_call.1} parent=43 // pred_check
        %p413 = pneg %p171
      $region46: #{tpu_custom_call.1} parent=43 // pred_check_branch
        %415 = sbr.rel (%p413) target = $region48
      $region47: #{tpu_custom_call.1} parent=43 // pred_region
        _
      $region48: #{tpu_custom_call.1} parent=43 // pred_fallthru
        _
    $region44: #{tpu_custom_call.1} parent=5 // pred_fallthru
      _
    %p416 = scmp.le.s32.totalorder 2, %s12
    // Predicated region
    $region49: #{tpu_custom_call.1} parent=5 // pred_check
      %p417 = pneg %p416
    $region50: #{tpu_custom_call.1} parent=5 // pred_check_branch
      %419 = sbr.rel (%p417) target = $region52
    $region51: #{tpu_custom_call.1} parent=5 // pred_region
      %s420 = ssub.s32 %s12, 2
      // Predicated region
      $region53: #{tpu_custom_call.1} parent=51 // pred_check
        %p421 = pneg %p177
      $region54: #{tpu_custom_call.1} parent=51 // pred_check_branch
        %423 = sbr.rel (%p421) target = $region56
      $region55: #{tpu_custom_call.1} parent=51 // pred_region
        %p424 = scmp.lt.s32.totalorder %s18, 2
        %s425 = scalar_select %p424, %s18, 2
        %s426 = smul.addr %s425, 8
        %s427 = scalar_lea.vmem %s6, %s426
      $region56: #{tpu_custom_call.1} parent=51 // pred_fallthru
        _
    $region52: #{tpu_custom_call.1} parent=5 // pred_fallthru
      _
  $region6: #{tpu_custom_call.1} parent=0 // loop_footer
    %s16 = sadd.s32 1, %s12
  $region7: #{tpu_custom_call.1} parent=0 // loop_footer_branch
    %11 = sbr.rel target = $region3
  $region8: #{tpu_custom_call.1} parent=0 // loop_exit
    _

</llo_original>
